<compile_context>
chip_gen: v5e
topology: v5e:2x2
jax: 0.10.0
libtpu: 0.0.40
codegen_flags: <defaults>
</compile_context>

<pallas_src>
from functools import partial

import jax
import jax.numpy as jnp
from jax.experimental import pallas as pl
from jax.experimental.pallas import tpu as pltpu


# --------------------------------------------------------------------------- #
# Packed-parameter blob layout (all offsets are static Python ints).
# --------------------------------------------------------------------------- #
def _align8(n: int) -> int:
    return (n + 7) // 8 * 8


def _blob_layout(in_dim: int, hidden: int):
    off_b1 = _align8(in_dim)              # W1' occupies rows [0, in_dim)
    off_w2 = _align8(off_b1 + 1)
    off_b2 = _align8(off_w2 + hidden)
    off_w3 = _align8(off_b2 + 1)
    off_b3 = _align8(off_w3 + 1)
    rows = _align8(off_b3 + 1)
    return off_b1, off_w2, off_b2, off_w3, off_b3, rows


def pack_q_params(params, state_dim: int):
    """Fold both normalizations into fc1 and pack all weights into one blob.

    Called once when params change (outside the hot path). Returns a single
    [rows, hidden] f32 array.
    """
    sd = state_dim
    xmean = params["xmean"].astype(jnp.float32)
    xstd = params["xstd"].astype(jnp.float32)
    in_dim = xmean.shape[0]

    # x_norm = ((x - mean_pre)/std_pre - xmean)/xstd = x*scale - shift, where
    # the "pre" stats are xmean/xstd on the state slice and 0/1 on the action
    # slice (reproducing the intentional double normalization of the state).
    inv_std = 1.0 / xstd
    inv_std_pre = jnp.concatenate([inv_std[:sd], jnp.ones((in_dim - sd,), jnp.float32)])
    mean_pre = jnp.concatenate([xmean[:sd], jnp.zeros((in_dim - sd,), jnp.float32)])
    scale = inv_std_pre * inv_std                       # 1/(std_pre*std_full)
    shift = mean_pre * scale + xmean * inv_std          # x_norm = x*scale - shift

    w1 = params["w1"].astype(jnp.float32)               # [in_dim, H]
    hidden = w1.shape[1]
    w1_folded = w1 * scale[:, None]
    b1_folded = params["b1"].astype(jnp.float32) - shift @ w1

    off_b1, off_w2, off_b2, off_w3, off_b3, rows = _blob_layout(in_dim, hidden)

    blob = jnp.zeros((rows, hidden), jnp.float32)
    blob = blob.at[:in_dim].set(w1_folded)
    blob = blob.at[off_b1].set(b1_folded)
    blob = blob.at[off_w2:off_w2 + hidden].set(params["w2"].astype(jnp.float32))
    blob = blob.at[off_b2].set(params["b2"].astype(jnp.float32))
    blob = blob.at[off_w3].set(params["w3"].reshape(hidden).astype(jnp.float32))
    # b3 is broadcast across the whole row so the kernel never touches a lone
    # (1,1) VMEM tile; the kernel picks lane 0 of the loaded row.
    blob = blob.at[off_b3].set(jnp.full((hidden,), params["b3"][0], jnp.float32))
    return blob


# --------------------------------------------------------------------------- #
# Kernel
# --------------------------------------------------------------------------- #
def q_kernel(x_ref, blob_ref, o_ref, *, in_dim, hidden):
    off_b1, off_w2, off_b2, off_w3, off_b3, _ = _blob_layout(in_dim, hidden)

    # Static, zero-cost carving of the packed parameter blob.
    w1 = blob_ref[0:in_dim, :]
    b1 = blob_ref[off_b1:off_b1 + 1, :]
    w2 = blob_ref[off_w2:off_w2 + hidden, :]
    b2 = blob_ref[off_b2:off_b2 + 1, :]
    w3 = blob_ref[off_w3:off_w3 + 1, :]
    b3_row = blob_ref[off_b3:off_b3 + 1, :]             # b3 replicated over lanes

    # fc1 (both normalizations pre-folded into w1/b1) + ReLU.
    h1 = jnp.dot(x_ref[...], w1, preferred_element_type=jnp.float32)
    h1 = jnp.maximum(h1 + b1, 0.0)

    # fc2 + ReLU.
    h2 = jnp.dot(h1, w2, preferred_element_type=jnp.float32)
    h2 = jnp.maximum(h2 + b2, 0.0)

    # fc3 has a single output column: VPU multiply + XLU cross-lane reduce
    # instead of occupying the MXU for 1/128th of its lanes (keep as is).
    o_ref[...] = jnp.sum(h2 * w3, axis=-1, keepdims=True) + b3_row[:, :1]


# --------------------------------------------------------------------------- #
# Wrapper
# --------------------------------------------------------------------------- #
@jax.jit
def q_forward(s, a, blob):
    """Pallas-fused Q(s, a) -> (batch, 1). `blob` comes from pack_q_params."""
    # TODO(synk): is_discrete one_hot(a) path not implemented (continuous actions only).
    s = s.astype(jnp.float32)
    a = a.astype(jnp.float32)
    x = jnp.concatenate([s, a], axis=-1)                 # tiny; keeps fc1 as one matmul

    B, in_dim = x.shape
    rows, hidden = blob.shape

    # Batch grid: one full-array block at small B; <=512-row tiles otherwise so
    # VMEM stays bounded and the grid can shard across TensorCores (v7x).
    tb = B if B <= 512 else 512
    grid = (pl.cdiv(B, tb),)

    kernel = partial(q_kernel, in_dim=in_dim, hidden=hidden)
    return pl.pallas_call(
        kernel,
        out_shape=jax.ShapeDtypeStruct((B, 1), jnp.float32),
        grid=grid,
        in_specs=[
            pl.BlockSpec((tb, in_dim), lambda i: (i, 0)),
            pl.BlockSpec((rows, hidden), lambda i: (0, 0)),
        ],
        out_specs=pl.BlockSpec((tb, 1), lambda i: (i, 0)),
        compiler_params=pltpu.CompilerParams(dimension_semantics=("parallel",)),
    )(x, blob)


# --------------------------------------------------------------------------- #
# Init + pure-JAX reference
# --------------------------------------------------------------------------- #
def xavier_uniform(key, fan_in, fan_out):
    limit = jnp.sqrt(6.0 / (fan_in + fan_out))
    # stored as [in, out] (transpose of PyTorch's [out, in])
    return jax.random.uniform(key, (fan_in, fan_out), jnp.float32, -limit, limit)


def init_params(key, state_dim, action_dim, hidden_dim):
    in_dim = state_dim + action_dim
    k1, k2, k3, k4, k5 = jax.random.split(key, 5)
    return {
        "w1": xavier_uniform(k1, in_dim, hidden_dim),
        "b1": jnp.zeros((hidden_dim,), jnp.float32),
        "w2": xavier_uniform(k2, hidden_dim, hidden_dim),
        "b2": jnp.zeros((hidden_dim,), jnp.float32),
        "w3": xavier_uniform(k3, hidden_dim, 1),
        "b3": jnp.zeros((1,), jnp.float32),
        "xmean": jax.random.normal(k4, (in_dim,), jnp.float32),
        "xstd": jnp.abs(jax.random.normal(k5, (in_dim,), jnp.float32)) + 0.5,
    }


def q_reference(s, a, params):
    """Pure-JAX reference matching the PyTorch forward exactly (two divides)."""
    state_dim = s.shape[-1]
    xmean, xstd = params["xmean"], params["xstd"]
    s = (s - xmean[:state_dim]) / xstd[:state_dim]
    x = jnp.concatenate([s, a], axis=-1)
    x = (x - xmean) / xstd
    x = jnp.maximum(x @ params["w1"] + params["b1"], 0.0)
    x = jnp.maximum(x @ params["w2"] + params["b2"], 0.0)
    return x @ params["w3"] + params["b3"]


if __name__ == "__main__":
    state_dim, action_dim, hidden_dim, batch = 12, 4, 32, 8

    key = jax.random.PRNGKey(0)
    kp, ks, ka = jax.random.split(key, 3)
    params = init_params(kp, state_dim, action_dim, hidden_dim)
    s = jax.random.normal(ks, (batch, state_dim), jnp.float32)
    a = jax.random.normal(ka, (batch, action_dim), jnp.float32)

    blob = jax.block_until_ready(pack_q_params(params, state_dim))  # fold once

    out = q_forward(s, a, blob)
    out = jax.block_until_ready(out)

    ref = q_reference(s, a, params)
    assert out.shape == (batch, 1)
    # The fold replaces two divides with a scale/shift (mathematically exact);
    # only rounding order changes.
    assert jnp.allclose(out, ref, atol=1e-3, rtol=1e-3), (
        f"max abs err = {jnp.max(jnp.abs(out - ref))}")
    print("KERNEL_OK")
</pallas_src>

<mosaic_0001>
module attributes {stable_mosaic.version = 11 : i64} {
  func.func @q_kernel(%arg0: i32, %arg1: memref<8x16xf32, #tpu.memory_space<vmem>>, %arg2: memref<80x32xf32, #tpu.memory_space<vmem>>, %arg3: memref<8x1xf32, #tpu.memory_space<vmem>>) attributes {dimension_semantics = [#tpu.dimension_semantics<parallel>], iteration_bounds = array<i64: 1>, scalar_prefetch = 0 : i64, scratch_operands = 0 : i64, tpu.core_type = #tpu.core_type<tc>, window_params = [{transform_indices = @transform_0, window_bounds = array<i64: 8, 16>}, {pipeline_mode = #tpu.pipeline_mode<synchronous>, transform_indices = @transform_1, window_bounds = array<i64: 80, 32>}, {transform_indices = @transform_2, window_bounds = array<i64: 8, 1>}]} {
    %c0 = arith.constant 0 : index
    %c0_0 = arith.constant 0 : index
    %0 = vector.load %arg2[%c0, %c0_0] : memref<80x32xf32, #tpu.memory_space<vmem>>, vector<16x32xf32>
    %c16 = arith.constant 16 : index
    %c0_1 = arith.constant 0 : index
    %1 = vector.load %arg2[%c16, %c0_1] : memref<80x32xf32, #tpu.memory_space<vmem>>, vector<1x32xf32>
    %c24 = arith.constant 24 : index
    %c0_2 = arith.constant 0 : index
    %2 = vector.load %arg2[%c24, %c0_2] : memref<80x32xf32, #tpu.memory_space<vmem>>, vector<32x32xf32>
    %c56 = arith.constant 56 : index
    %c0_3 = arith.constant 0 : index
    %3 = vector.load %arg2[%c56, %c0_3] : memref<80x32xf32, #tpu.memory_space<vmem>>, vector<1x32xf32>
    %c64 = arith.constant 64 : index
    %c0_4 = arith.constant 0 : index
    %4 = vector.load %arg2[%c64, %c0_4] : memref<80x32xf32, #tpu.memory_space<vmem>>, vector<1x32xf32>
    %c72 = arith.constant 72 : index
    %c0_5 = arith.constant 0 : index
    %5 = vector.load %arg2[%c72, %c0_5] : memref<80x32xf32, #tpu.memory_space<vmem>>, vector<1x32xf32>
    %c0_6 = arith.constant 0 : index
    %c0_7 = arith.constant 0 : index
    %6 = vector.load %arg1[%c0_6, %c0_7] : memref<8x16xf32, #tpu.memory_space<vmem>>, vector<8x16xf32>
    %cst = arith.constant dense<0.000000e+00> : vector<8x32xf32>
    %7 = tpu.matmul %6, %0, %cst {dimension_numbers = #tpu.dot_dimension_numbers<[1], [0], [0], [1], [0, 0, 1, 1], [], []>} : vector<8x16xf32>, vector<16x32xf32>, vector<8x32xf32> -> vector<8x32xf32>
    %8 = vector.broadcast %1 : vector<1x32xf32> to vector<8x32xf32>
    %9 = arith.addf %7, %8 : vector<8x32xf32>
    %cst_8 = arith.constant 0.000000e+00 : f32
    %10 = vector.broadcast %cst_8 : f32 to vector<8x32xf32>
    %11 = arith.maximumf %9, %10 : vector<8x32xf32>
    %cst_9 = arith.constant dense<0.000000e+00> : vector<8x32xf32>
    %12 = tpu.matmul %11, %2, %cst_9 {dimension_numbers = #tpu.dot_dimension_numbers<[1], [0], [0], [1], [0, 0, 1, 1], [], []>} : vector<8x32xf32>, vector<32x32xf32>, vector<8x32xf32> -> vector<8x32xf32>
    %13 = vector.broadcast %3 : vector<1x32xf32> to vector<8x32xf32>
    %14 = arith.addf %12, %13 : vector<8x32xf32>
    %cst_10 = arith.constant 0.000000e+00 : f32
    %15 = vector.broadcast %cst_10 : f32 to vector<8x32xf32>
    %16 = arith.maximumf %14, %15 : vector<8x32xf32>
    %17 = vector.broadcast %4 : vector<1x32xf32> to vector<8x32xf32>
    %18 = arith.mulf %16, %17 : vector<8x32xf32>
    %cst_11 = arith.constant dense<0.000000e+00> : vector<8xf32>
    %19 = vector.multi_reduction <add>, %18, %cst_11 [1] : vector<8x32xf32> to vector<8xf32>
    %20 = vector.shape_cast %19 : vector<8xf32> to vector<8x1xf32>
    %21 = vector.extract_strided_slice %5 {offsets = [0, 0], sizes = [1, 1], strides = [1, 1]} : vector<1x32xf32> to vector<1x1xf32>
    %22 = vector.broadcast %21 : vector<1x1xf32> to vector<8x1xf32>
    %23 = arith.addf %20, %22 : vector<8x1xf32>
    %c0_12 = arith.constant 0 : index
    %c0_13 = arith.constant 0 : index
    %24 = vector.load %arg3[%c0_12, %c0_13] : memref<8x1xf32, #tpu.memory_space<vmem>>, vector<8x1xf32>
    tpu.vector_store %arg3[%c0_12, %c0_13], %23 {strides = array<i32>} : memref<8x1xf32, #tpu.memory_space<vmem>>, vector<8x1xf32>,
    return
  }
  func.func @transform_0(%arg0: i32) -> (i32, i32) {
    %c0_i32 = arith.constant 0 : i32
    %c0_i32_0 = arith.constant 0 : i32
    return %arg0, %c0_i32 : i32, i32
  }
  func.func @transform_1(%arg0: i32) -> (i32, i32) {
    %c0_i32 = arith.constant 0 : i32
    %c0_i32_0 = arith.constant 0 : i32
    %c0_i32_1 = arith.constant 0 : i32
    return %c0_i32, %c0_i32_0 : i32, i32
  }
  func.func @transform_2(%arg0: i32) -> (i32, i32) {
    %c0_i32 = arith.constant 0 : i32
    %c0_i32_0 = arith.constant 0 : i32
    return %arg0, %c0_i32 : i32, i32
  }
}

</mosaic_0001>

<llo_original>
// kernel: q_forward.1
$region0: #{q_forward.1}
  #allocation0 [shape = 'u32[]', space=smem, size = 0x4, offset = 0x4, fixed_abs, tag = 'smem constant byte address 0x4 - core index']
  #allocation1 [shape = 'u32[72,128]{1,0:T(1,128)}', space=vmem, size = 0x9000, scoped, tag = 'internal scratch']
  %s0 = inlined_call_operand.vmem [shape: f32[8,16], index: 0, kind: input, shape index: {}]
  %s1 = inlined_call_operand.vmem [shape: f32[80,32], index: 1, kind: input, shape index: {}]
  %s2 = inlined_call_operand.vmem [shape: f32[8,1], index: 2, kind: output, shape index: {}]
  %s3 = sld [smem:[#allocation0]]
  $region18: #{q_forward.1} parent=0
    _
  %s5 = ssub.s32 1, %s3
  %s6 = scalar_select 0, %s5, %s3
  // Predicated region
  $region2: #{q_forward.1} parent=0 // pred_check
    _
  $region3: #{q_forward.1} parent=0 // pred_check_branch
    %8 = sbr.rel (0) target = $region5
  $region4: #{q_forward.1} parent=0 // pred_region
    _
  $region5: #{q_forward.1} parent=0 // pred_fallthru
    _
  // Predicated region
  $region6: #{q_forward.1} parent=0 // pred_check
    _
  $region7: #{q_forward.1} parent=0 // pred_check_branch
    %10 = sbr.rel (0) target = $region9
  $region8: #{q_forward.1} parent=0 // pred_region
    _
  $region9: #{q_forward.1} parent=0 // pred_fallthru
    _
  %v11 = vld [vmem:[%s1] sm:$0xff]
  %v12 = vld [vmem:[%s1 + $0x8] sm:$0xff]
  %v13 = vld [vmem:[%s1 + $0x10] sm:$0x1]
  %v14 = vld [vmem:[%s1 + $0x18] sm:$0xff]
  %v15 = vld [vmem:[%s1 + $0x20] sm:$0xff]
  %v16 = vld [vmem:[%s1 + $0x28] sm:$0xff]
  %v17 = vld [vmem:[%s1 + $0x30] sm:$0xff]
  %v18 = vld [vmem:[%s1 + $0x38] sm:$0x1]
  %v19 = vld [vmem:[%s1 + $0x40] sm:$0x1]
  %v20 = vld [vmem:[%s1 + $0x48] sm:$0x1]
  %v21 = vld [vmem:[%s0] sm:$0xff]
  %v22 = vperm.slane %v13, 0
  %vm23 = vcmask 130048
  %v25 = vsel %vm23, %v21, 0
  %27 = vmatpush.msra.mxu0 0.0
  %28 = vmatpush.msra.mxu0 0.0
  %29 = vmatpush.msra.mxu0 0.0
  %30 = vmatpush.msra.mxu0 0.0
  %31 = vmatpush.msra.mxu0 0.0
  %32 = vmatpush.msra.mxu0 0.0
  %33 = vmatpush.msra.mxu0 0.0
  %34 = vmatpush.msra.mxu0 0.0
  %35 = vmatpush.msra.mxu0 0.0
  %36 = vmatpush.msra.mxu0 0.0
  %37 = vmatpush.msra.mxu0 0.0
  %38 = vmatpush.msra.mxu0 0.0
  %39 = vmatpush.msra.mxu0 0.0
  %40 = vmatpush.msra.mxu0 0.0
  %41 = vmatpush.msra.mxu0 %v12
  %42 = vmatpush.msra.mxu0 %v11
  %43 = vmatmul.f32.gmra.mxu0 %v25
  %v44 = vpop.f32.mrf.mxu0
  %v45 = vadd.f32 %v22, %v44
  %46 = vdwg.mxu0
  %v47 = vmax.f32 %v45, 0.0
  %v48 = vperm.slane %v18, 0
  %vm49 = vcmask 261120
  %v51 = vsel %vm49, %v47, 0
  %53 = vmatpush.msra.mxu0 0.0
  %54 = vmatpush.msra.mxu0 0.0
  %55 = vmatpush.msra.mxu0 0.0
  %56 = vmatpush.msra.mxu0 0.0
  %57 = vmatpush.msra.mxu0 0.0
  %58 = vmatpush.msra.mxu0 0.0
  %59 = vmatpush.msra.mxu0 0.0
  %60 = vmatpush.msra.mxu0 0.0
  %61 = vmatpush.msra.mxu0 0.0
  %62 = vmatpush.msra.mxu0 0.0
  %63 = vmatpush.msra.mxu0 0.0
  %64 = vmatpush.msra.mxu0 0.0
  %65 = vmatpush.msra.mxu0 %v17
  %66 = vmatpush.msra.mxu0 %v16
  %67 = vmatpush.msra.mxu0 %v15
  %68 = vmatpush.msra.mxu0 %v14
  %69 = vmatmul.f32.gmra.mxu0 %v51
  %v70 = vpop.f32.mrf.mxu0
  %v71 = vadd.f32 %v48, %v70
  %72 = vdwg.mxu0
  %v73 = vmax.f32 %v71, 0.0
  %v74 = vperm.slane %v19, 0
  %v75 = vmul.f32 %v73, %v74
  %v76 = vsel %vm49, %v75, 0.0
  %77 = vadd.xlane.f32.xlu0 %v76
  %v78 = vpop.xlane.xlu0 %77
  %v79 = vperm.slane %v20, 0
  %v80 = vadd.f32 %v78, %v79
  %vm81 = vcmask 7168
  %82 = vst.msk [vmem:[%s2] sm:$0xff] %vm81, %v80
  // Predicated region
  $region10: #{q_forward.1} parent=0 // pred_check
    _
  $region11: #{q_forward.1} parent=0 // pred_check_branch
    %84 = sbr.rel (0) target = $region13
  $region12: #{q_forward.1} parent=0 // pred_region
    _
  $region13: #{q_forward.1} parent=0 // pred_fallthru
    _
  // Predicated region
  $region14: #{q_forward.1} parent=0 // pred_check
    _
  $region15: #{q_forward.1} parent=0 // pred_check_branch
    %86 = sbr.rel (0) target = $region17
  $region16: #{q_forward.1} parent=0 // pred_region
    _
  $region17: #{q_forward.1} parent=0 // pred_fallthru
    _

</llo_original>
